<compile_context>
chip_gen: v7x
topology: tpu7x:2x2x1
jax: 0.10.0
libtpu: 0.0.40
codegen_flags: <defaults>
</compile_context>

<pallas_src>
import jax
import jax.numpy as jnp
from jax.experimental import pallas as pl
from jax.experimental.pallas import tpu as pltpu

# Component order inside the kernel output / epilogue.
_T, _V, _P, _TV, _PV, _PT, _RD = range(7)


# ----------------------------------------------------------------------------- kernel
def _pid_pool_kernel(zt_ref, zv_ref, zp_ref, ztv_ref, zpv_ref, zpt_ref, zrd_ref,
                     out_ref):
    """Accumulate per-(batch-tile, seq-chunk) f32 sequence sums of the 7 components.

    out_ref block: (1, 7, b_tile, D), resident across the inner sequence axis.
    """
    n_idx = pl.program_id(2)

    @pl.when(n_idx == 0)
    def _():
        out_ref[...] = jnp.zeros_like(out_ref)

    comp_refs = (zt_ref, zv_ref, zp_ref, ztv_ref, zpv_ref, zpt_ref, zrd_ref)
    for c, ref in enumerate(comp_refs):
        out_ref[0, c] += jnp.sum(ref[...].astype(jnp.float32), axis=1)  # (b_tile, D)


# --------------------------------------------------------------------------- tiling
def _vmem_capacity_bytes():
    try:
        return int(pltpu.get_tpu_info().vmem_capacity_bytes)
    except Exception:
        return 64 * 1024 * 1024  # conservative (v7x per-TC VMEM)


def _sublane_min(itemsize):
    # f32 -> 8, bf16 -> 16, int8/fp8 -> 32 (min second-to-last tile dim).
    return max(8, 32 // max(int(itemsize), 1))


def _pick_batch_tile(batch):
    """Divisor of B that is a multiple of 8 (or full B), with num_b >= 2 when B >= 16."""
    if batch < 16:
        return 8 if batch % 8 == 0 else batch   # B == 8 -> 8; otherwise full B per block
    cap = min(16, batch // 2)                   # guarantee >= 2 batch grid steps (megacore)
    t = (cap // 8) * 8
    while t >= 8:
        if batch % t == 0:
            return t
        t -= 8
    return batch  # odd B > 16 with no multiple-of-8 divisor: full-B fallback


def _pick_seq_tile(seq, b_tile, d, itemsize, sub_min, budget_bytes):
    """Sequence tile so 7 double-buffered input streams fit the streaming budget."""
    per_n_bytes = 7 * 2 * b_tile * d * itemsize
    target = max(sub_min, budget_bytes // max(per_n_bytes, 1))
    if target >= seq:
        return seq                            # small inputs: single step over the chunk
    t = (target // sub_min) * sub_min
    while t >= sub_min:
        if seq % t == 0:
            return t
        t -= sub_min
    # TODO(synk): N with no sub_min-multiple divisor under budget falls back to full N.
    return seq


# -------------------------------------------------------------------------- wrapper
def pid_regularization_loss(component_dict, component_weights):
    """JAX/Pallas equivalent of PIDRegularizationLoss.forward(..., questions=None)."""
    comps = (
        component_dict['Z_T_unique'],
        component_dict['Z_V_unique'],
        component_dict['Z_P_unique'],
        component_dict['Z_TV_synergy'],
        component_dict['Z_PV_synergy'],
        component_dict['Z_PT_synergy'],
        component_dict['Z_redundant'],
    )
    _ = component_dict['Z_higher_synergy']     # read but unused by the reference forward

    B, N, D = comps[0].shape
    itemsize = jnp.dtype(comps[0].dtype).itemsize
    f32 = jnp.float32

    # --- chip-aware VMEM budgets -------------------------------------------------
    vmem_cap = _vmem_capacity_bytes()
    if vmem_cap >= 96 * 1024 * 1024:           # v5e / v6e: 128 MiB physical VMEM
        stream_budget = 64 * 1024 * 1024
        vmem_limit = 96 * 1024 * 1024
    else:                                      # v7x: 64 MiB per TC (or unknown -> safe)
        stream_budget = 40 * 1024 * 1024
        vmem_limit = 48 * 1024 * 1024

    # --- tiling ------------------------------------------------------------------
    b_tile = _pick_batch_tile(B)
    sub_min = _sublane_min(itemsize)
    n_tile = _pick_seq_tile(N, b_tile, D, itemsize, sub_min, stream_budget)
    num_b = B // b_tile
    num_seq_blocks = N // n_tile

    # Split sequence blocks into (parallel chunks) x (inner reduction) so both v7x
    # TensorCores get work even when num_b == 1.
    if num_b >= 2 or num_seq_blocks < 2 or (num_seq_blocks % 2 != 0):
        num_nc, num_n = 1, num_seq_blocks
    else:
        num_nc, num_n = 2, num_seq_blocks // 2

    # Guard: fallback tilings (full N / full odd B) must not trip the base limit.
    required = 7 * 2 * b_tile * n_tile * D * itemsize + 2 * 7 * b_tile * D * 4
    vmem_limit = max(vmem_limit, required + 4 * 1024 * 1024)

    z_spec = pl.BlockSpec((b_tile, n_tile, D),
                          lambda b, nc, n: (b, nc * num_n + n, 0))
    out_spec = pl.BlockSpec((1, 7, b_tile, D),
                            lambda b, nc, n: (nc, 0, b, 0))

    cost = pl.CostEstimate(
        flops=7 * B * N * D,
        transcendentals=0,
        bytes_accessed=7 * B * N * D * itemsize + num_nc * 7 * B * D * 4,
    )

    partials = pl.pallas_call(
        _pid_pool_kernel,
        out_shape=jax.ShapeDtypeStruct((num_nc, 7, B, D), jnp.float32),
        grid_spec=pltpu.PrefetchScalarGridSpec(
            num_scalar_prefetch=0,
            grid=(num_b, num_nc, num_n),       # batch, seq-chunk (parallel); inner seq last
            in_specs=[z_spec] * 7,
            out_specs=out_spec,
        ),
        compiler_params=pltpu.CompilerParams(
            dimension_semantics=("parallel", "parallel", "arbitrary"),
            vmem_limit_bytes=int(vmem_limit),
        ),
        cost_estimate=cost,
    )(*comps)

    # --- tiny XLA epilogue: pooled means -> 12 |cos| + entropy -> losses ----------
    g = jnp.sum(partials, axis=0) * f32(1.0 / N)            # (7, B, D) pooled means
    nsq = jnp.sum(g * g, axis=-1)                           # (7, B)
    eps2 = f32(1e-8) * f32(1e-8)                            # torch cosine_similarity clamp

    def abs_cos_mean(x, y):
        dot = jnp.sum(g[x] * g[y], axis=-1)                 # (B,)
        inv = jax.lax.rsqrt(jnp.maximum(nsq[x] * nsq[y], eps2))
        return jnp.mean(jnp.abs(dot * inv))

    uniqueness = (abs_cos_mean(_T, _V) + abs_cos_mean(_T, _P) + abs_cos_mean(_V, _P)) / 3.0
    tv_score = 1.0 - (abs_cos_mean(_TV, _T) + abs_cos_mean(_TV, _V)) / 2.0
    pv_score = 1.0 - (abs_cos_mean(_PV, _P) + abs_cos_mean(_PV, _V)) / 2.0
    pt_score = 1.0 - (abs_cos_mean(_PT, _P) + abs_cos_mean(_PT, _T)) / 2.0
    synergy = -(tv_score + pv_score + pt_score) / 3.0
    redundancy = -(abs_cos_mean(_RD, _T) + abs_cos_mean(_RD, _V) + abs_cos_mean(_RD, _P)) / 3.0

    cw = component_weights.astype(f32) + f32(1e-8)
    entropy = -jnp.sum(cw * jnp.log(cw), axis=1)
    balance = -jnp.mean(entropy)

    zero = jnp.zeros((), f32)
    # TODO(synk): string-based spatial / question-type branches have no device
    # equivalent; this implements the questions=None path (both losses exactly 0).
    return {
        'uniqueness_loss': uniqueness,
        'synergy_loss': synergy,
        'redundancy_loss': redundancy,
        'component_balance_loss': balance,
        'spatial_reasoning_loss': zero,
        'question_adaptive_loss': zero,
    }


# ------------------------------------------------------------------------ reference
def _reference_losses(component_dict, component_weights):
    """Pure-JAX mirror of the PyTorch forward (questions=None) for parity checks."""
    f32 = jnp.float32

    def pooled(name):
        return jnp.mean(component_dict[name].astype(f32), axis=1)

    gT, gV, gP = pooled('Z_T_unique'), pooled('Z_V_unique'), pooled('Z_P_unique')
    gTV, gPV, gPT = pooled('Z_TV_synergy'), pooled('Z_PV_synergy'), pooled('Z_PT_synergy')
    gR = pooled('Z_redundant')

    def abs_cos(a, b):
        dot = jnp.sum(a * b, axis=-1)
        den = jnp.sqrt(jnp.maximum(jnp.sum(a * a, -1) * jnp.sum(b * b, -1), f32(1e-16)))
        return jnp.mean(jnp.abs(dot / den))

    uniq = (abs_cos(gT, gV) + abs_cos(gT, gP) + abs_cos(gV, gP)) / 3.0
    tv = 1.0 - (abs_cos(gTV, gT) + abs_cos(gTV, gV)) / 2.0
    pv = 1.0 - (abs_cos(gPV, gP) + abs_cos(gPV, gV)) / 2.0
    pt = 1.0 - (abs_cos(gPT, gP) + abs_cos(gPT, gT)) / 2.0
    syn = -(tv + pv + pt) / 3.0
    red = -(abs_cos(gR, gT) + abs_cos(gR, gV) + abs_cos(gR, gP)) / 3.0
    cw = component_weights.astype(f32) + f32(1e-8)
    bal = -jnp.mean(-jnp.sum(cw * jnp.log(cw), axis=1))
    return {'uniqueness_loss': uniq, 'synergy_loss': syn, 'redundancy_loss': red,
            'component_balance_loss': bal}


if __name__ == "__main__":
    # Small demo shapes: batch=2, seq=8, fusion_dim=128 (lane-friendly).
    B, N, D = 2, 8, 128
    key = jax.random.PRNGKey(0)
    keys = jax.random.split(key, 9)

    component_names = ['Z_T_unique', 'Z_V_unique', 'Z_P_unique',
                       'Z_TV_synergy', 'Z_PV_synergy', 'Z_PT_synergy',
                       'Z_redundant', 'Z_higher_synergy']
    component_dict = {
        name: jax.random.normal(k, (B, N, D), dtype=jnp.float32)
        for name, k in zip(component_names, keys[:8])
    }
    component_weights = jax.nn.softmax(
        jax.random.normal(keys[8], (B, 8), dtype=jnp.float32), axis=-1)

    losses = pid_regularization_loss(component_dict, component_weights)
    losses = jax.tree_util.tree_map(jax.block_until_ready, losses)

    ref = _reference_losses(component_dict, component_weights)
    for k_, v_ in losses.items():
        assert jnp.isfinite(v_), f"non-finite loss {k_}"
        if k_ in ref:
            assert jnp.allclose(v_, ref[k_], rtol=1e-4, atol=1e-4), (
                f"mismatch {k_}: {v_} vs {ref[k_]}")
    print("KERNEL_OK")
</pallas_src>

<mosaic_0001>
module attributes {stable_mosaic.version = 11 : i64} {
  func.func @_pid_pool_kernel(%arg0: i32, %arg1: i32, %arg2: i32, %arg3: memref<2x8x128xf32, #tpu.memory_space<vmem>>, %arg4: memref<2x8x128xf32, #tpu.memory_space<vmem>>, %arg5: memref<2x8x128xf32, #tpu.memory_space<vmem>>, %arg6: memref<2x8x128xf32, #tpu.memory_space<vmem>>, %arg7: memref<2x8x128xf32, #tpu.memory_space<vmem>>, %arg8: memref<2x8x128xf32, #tpu.memory_space<vmem>>, %arg9: memref<2x8x128xf32, #tpu.memory_space<vmem>>, %arg10: memref<1x7x2x128xf32, #tpu.memory_space<vmem>>) attributes {dimension_semantics = [#tpu.dimension_semantics<parallel>, #tpu.dimension_semantics<parallel>, #tpu.dimension_semantics<arbitrary>], iteration_bounds = array<i64: 1, 1, 1>, scalar_prefetch = 0 : i64, scratch_operands = 0 : i64, tpu.core_type = #tpu.core_type<tc>, window_params = [{transform_indices = @transform_0, window_bounds = array<i64: 2, 8, 128>}, {transform_indices = @transform_1, window_bounds = array<i64: 2, 8, 128>}, {transform_indices = @transform_2, window_bounds = array<i64: 2, 8, 128>}, {transform_indices = @transform_3, window_bounds = array<i64: 2, 8, 128>}, {transform_indices = @transform_4, window_bounds = array<i64: 2, 8, 128>}, {transform_indices = @transform_5, window_bounds = array<i64: 2, 8, 128>}, {transform_indices = @transform_6, window_bounds = array<i64: 2, 8, 128>}, {transform_indices = @transform_7, window_bounds = array<i64: 1, 7, 2, 128>}]} {
    %c0_i32 = arith.constant 0 : i32
    %0 = arith.cmpi eq, %arg2, %c0_i32 : i32
    %1 = arith.extui %0 : i1 to i32
    %c0_i32_0 = arith.constant 0 : i32
    %2 = arith.cmpi ne, %1, %c0_i32_0 : i32
    scf.if %2 {
      %cst_77 = arith.constant 0.000000e+00 : f32
      %59 = vector.broadcast %cst_77 : f32 to vector<1x7x2x128xf32>
      %c0_78 = arith.constant 0 : index
      %c0_79 = arith.constant 0 : index
      %c0_80 = arith.constant 0 : index
      %c0_81 = arith.constant 0 : index
      %60 = vector.load %arg10[%c0_78, %c0_79, %c0_80, %c0_81] : memref<1x7x2x128xf32, #tpu.memory_space<vmem>>, vector<1x7x2x128xf32>
      tpu.vector_store %arg10[%c0_78, %c0_79, %c0_80, %c0_81], %59 {strides = array<i32>} : memref<1x7x2x128xf32, #tpu.memory_space<vmem>>, vector<1x7x2x128xf32>,
    } else {
    }
    %c0 = arith.constant 0 : index
    %c0_1 = arith.constant 0 : index
    %c0_2 = arith.constant 0 : index
    %c0_3 = arith.constant 0 : index
    %3 = vector.load %arg10[%c0, %c0_1, %c0_2, %c0_3] : memref<1x7x2x128xf32, #tpu.memory_space<vmem>>, vector<1x1x2x128xf32>
    %4 = vector.shape_cast %3 : vector<1x1x2x128xf32> to vector<2x128xf32>
    %c0_4 = arith.constant 0 : index
    %c0_5 = arith.constant 0 : index
    %c0_6 = arith.constant 0 : index
    %5 = vector.load %arg3[%c0_4, %c0_5, %c0_6] : memref<2x8x128xf32, #tpu.memory_space<vmem>>, vector<2x8x128xf32>
    %cst = arith.constant dense<0.000000e+00> : vector<2x128xf32>
    %6 = vector.multi_reduction <add>, %5, %cst [1] : vector<2x8x128xf32> to vector<2x128xf32>
    %7 = arith.addf %4, %6 : vector<2x128xf32>
    %c0_7 = arith.constant 0 : index
    %c0_8 = arith.constant 0 : index
    %c0_9 = arith.constant 0 : index
    %c0_10 = arith.constant 0 : index
    %8 = vector.load %arg10[%c0_7, %c0_8, %c0_9, %c0_10] : memref<1x7x2x128xf32, #tpu.memory_space<vmem>>, vector<1x1x2x128xf32>
    %9 = vector.shape_cast %8 : vector<1x1x2x128xf32> to vector<2x128xf32>
    %10 = vector.shape_cast %7 : vector<2x128xf32> to vector<1x1x2x128xf32>
    tpu.vector_store %arg10[%c0_7, %c0_8, %c0_9, %c0_10], %10 {strides = array<i32>} : memref<1x7x2x128xf32, #tpu.memory_space<vmem>>, vector<1x1x2x128xf32>,
    %c0_11 = arith.constant 0 : index
    %c1 = arith.constant 1 : index
    %c0_12 = arith.constant 0 : index
    %c0_13 = arith.constant 0 : index
    %11 = vector.load %arg10[%c0_11, %c1, %c0_12, %c0_13] : memref<1x7x2x128xf32, #tpu.memory_space<vmem>>, vector<1x1x2x128xf32>
    %12 = vector.shape_cast %11 : vector<1x1x2x128xf32> to vector<2x128xf32>
    %c0_14 = arith.constant 0 : index
    %c0_15 = arith.constant 0 : index
    %c0_16 = arith.constant 0 : index
    %13 = vector.load %arg4[%c0_14, %c0_15, %c0_16] : memref<2x8x128xf32, #tpu.memory_space<vmem>>, vector<2x8x128xf32>
    %cst_17 = arith.constant dense<0.000000e+00> : vector<2x128xf32>
    %14 = vector.multi_reduction <add>, %13, %cst_17 [1] : vector<2x8x128xf32> to vector<2x128xf32>
    %15 = arith.addf %12, %14 : vector<2x128xf32>
    %c0_18 = arith.constant 0 : index
    %c1_19 = arith.constant 1 : index
    %c0_20 = arith.constant 0 : index
    %c0_21 = arith.constant 0 : index
    %16 = vector.load %arg10[%c0_18, %c1_19, %c0_20, %c0_21] : memref<1x7x2x128xf32, #tpu.memory_space<vmem>>, vector<1x1x2x128xf32>
    %17 = vector.shape_cast %16 : vector<1x1x2x128xf32> to vector<2x128xf32>
    %18 = vector.shape_cast %15 : vector<2x128xf32> to vector<1x1x2x128xf32>
    tpu.vector_store %arg10[%c0_18, %c1_19, %c0_20, %c0_21], %18 {strides = array<i32>} : memref<1x7x2x128xf32, #tpu.memory_space<vmem>>, vector<1x1x2x128xf32>,
    %c0_22 = arith.constant 0 : index
    %c2 = arith.constant 2 : index
    %c0_23 = arith.constant 0 : index
    %c0_24 = arith.constant 0 : index
    %19 = vector.load %arg10[%c0_22, %c2, %c0_23, %c0_24] : memref<1x7x2x128xf32, #tpu.memory_space<vmem>>, vector<1x1x2x128xf32>
    %20 = vector.shape_cast %19 : vector<1x1x2x128xf32> to vector<2x128xf32>
    %c0_25 = arith.constant 0 : index
    %c0_26 = arith.constant 0 : index
    %c0_27 = arith.constant 0 : index
    %21 = vector.load %arg5[%c0_25, %c0_26, %c0_27] : memref<2x8x128xf32, #tpu.memory_space<vmem>>, vector<2x8x128xf32>
    %cst_28 = arith.constant dense<0.000000e+00> : vector<2x128xf32>
    %22 = vector.multi_reduction <add>, %21, %cst_28 [1] : vector<2x8x128xf32> to vector<2x128xf32>
    %23 = arith.addf %20, %22 : vector<2x128xf32>
    %c0_29 = arith.constant 0 : index
    %c2_30 = arith.constant 2 : index
    %c0_31 = arith.constant 0 : index
    %c0_32 = arith.constant 0 : index
    %24 = vector.load %arg10[%c0_29, %c2_30, %c0_31, %c0_32] : memref<1x7x2x128xf32, #tpu.memory_space<vmem>>, vector<1x1x2x128xf32>
    %25 = vector.shape_cast %24 : vector<1x1x2x128xf32> to vector<2x128xf32>
    %26 = vector.shape_cast %23 : vector<2x128xf32> to vector<1x1x2x128xf32>
    tpu.vector_store %arg10[%c0_29, %c2_30, %c0_31, %c0_32], %26 {strides = array<i32>} : memref<1x7x2x128xf32, #tpu.memory_space<vmem>>, vector<1x1x2x128xf32>,
    %c0_33 = arith.constant 0 : index
    %c3 = arith.constant 3 : index
    %c0_34 = arith.constant 0 : index
    %c0_35 = arith.constant 0 : index
    %27 = vector.load %arg10[%c0_33, %c3, %c0_34, %c0_35] : memref<1x7x2x128xf32, #tpu.memory_space<vmem>>, vector<1x1x2x128xf32>
    %28 = vector.shape_cast %27 : vector<1x1x2x128xf32> to vector<2x128xf32>
    %c0_36 = arith.constant 0 : index
    %c0_37 = arith.constant 0 : index
    %c0_38 = arith.constant 0 : index
    %29 = vector.load %arg6[%c0_36, %c0_37, %c0_38] : memref<2x8x128xf32, #tpu.memory_space<vmem>>, vector<2x8x128xf32>
    %cst_39 = arith.constant dense<0.000000e+00> : vector<2x128xf32>
    %30 = vector.multi_reduction <add>, %29, %cst_39 [1] : vector<2x8x128xf32> to vector<2x128xf32>
    %31 = arith.addf %28, %30 : vector<2x128xf32>
    %c0_40 = arith.constant 0 : index
    %c3_41 = arith.constant 3 : index
    %c0_42 = arith.constant 0 : index
    %c0_43 = arith.constant 0 : index
    %32 = vector.load %arg10[%c0_40, %c3_41, %c0_42, %c0_43] : memref<1x7x2x128xf32, #tpu.memory_space<vmem>>, vector<1x1x2x128xf32>
    %33 = vector.shape_cast %32 : vector<1x1x2x128xf32> to vector<2x128xf32>
    %34 = vector.shape_cast %31 : vector<2x128xf32> to vector<1x1x2x128xf32>
    tpu.vector_store %arg10[%c0_40, %c3_41, %c0_42, %c0_43], %34 {strides = array<i32>} : memref<1x7x2x128xf32, #tpu.memory_space<vmem>>, vector<1x1x2x128xf32>,
    %c0_44 = arith.constant 0 : index
    %c4 = arith.constant 4 : index
    %c0_45 = arith.constant 0 : index
    %c0_46 = arith.constant 0 : index
    %35 = vector.load %arg10[%c0_44, %c4, %c0_45, %c0_46] : memref<1x7x2x128xf32, #tpu.memory_space<vmem>>, vector<1x1x2x128xf32>
    %36 = vector.shape_cast %35 : vector<1x1x2x128xf32> to vector<2x128xf32>
    %c0_47 = arith.constant 0 : index
    %c0_48 = arith.constant 0 : index
    %c0_49 = arith.constant 0 : index
    %37 = vector.load %arg7[%c0_47, %c0_48, %c0_49] : memref<2x8x128xf32, #tpu.memory_space<vmem>>, vector<2x8x128xf32>
    %cst_50 = arith.constant dense<0.000000e+00> : vector<2x128xf32>
    %38 = vector.multi_reduction <add>, %37, %cst_50 [1] : vector<2x8x128xf32> to vector<2x128xf32>
    %39 = arith.addf %36, %38 : vector<2x128xf32>
    %c0_51 = arith.constant 0 : index
    %c4_52 = arith.constant 4 : index
    %c0_53 = arith.constant 0 : index
    %c0_54 = arith.constant 0 : index
    %40 = vector.load %arg10[%c0_51, %c4_52, %c0_53, %c0_54] : memref<1x7x2x128xf32, #tpu.memory_space<vmem>>, vector<1x1x2x128xf32>
    %41 = vector.shape_cast %40 : vector<1x1x2x128xf32> to vector<2x128xf32>
    %42 = vector.shape_cast %39 : vector<2x128xf32> to vector<1x1x2x128xf32>
    tpu.vector_store %arg10[%c0_51, %c4_52, %c0_53, %c0_54], %42 {strides = array<i32>} : memref<1x7x2x128xf32, #tpu.memory_space<vmem>>, vector<1x1x2x128xf32>,
    %c0_55 = arith.constant 0 : index
    %c5 = arith.constant 5 : index
    %c0_56 = arith.constant 0 : index
    %c0_57 = arith.constant 0 : index
    %43 = vector.load %arg10[%c0_55, %c5, %c0_56, %c0_57] : memref<1x7x2x128xf32, #tpu.memory_space<vmem>>, vector<1x1x2x128xf32>
    %44 = vector.shape_cast %43 : vector<1x1x2x128xf32> to vector<2x128xf32>
    %c0_58 = arith.constant 0 : index
    %c0_59 = arith.constant 0 : index
    %c0_60 = arith.constant 0 : index
    %45 = vector.load %arg8[%c0_58, %c0_59, %c0_60] : memref<2x8x128xf32, #tpu.memory_space<vmem>>, vector<2x8x128xf32>
    %cst_61 = arith.constant dense<0.000000e+00> : vector<2x128xf32>
    %46 = vector.multi_reduction <add>, %45, %cst_61 [1] : vector<2x8x128xf32> to vector<2x128xf32>
    %47 = arith.addf %44, %46 : vector<2x128xf32>
    %c0_62 = arith.constant 0 : index
    %c5_63 = arith.constant 5 : index
    %c0_64 = arith.constant 0 : index
    %c0_65 = arith.constant 0 : index
    %48 = vector.load %arg10[%c0_62, %c5_63, %c0_64, %c0_65] : memref<1x7x2x128xf32, #tpu.memory_space<vmem>>, vector<1x1x2x128xf32>
    %49 = vector.shape_cast %48 : vector<1x1x2x128xf32> to vector<2x128xf32>
    %50 = vector.shape_cast %47 : vector<2x128xf32> to vector<1x1x2x128xf32>
    tpu.vector_store %arg10[%c0_62, %c5_63, %c0_64, %c0_65], %50 {strides = array<i32>} : memref<1x7x2x128xf32, #tpu.memory_space<vmem>>, vector<1x1x2x128xf32>,
    %c0_66 = arith.constant 0 : index
    %c6 = arith.constant 6 : index
    %c0_67 = arith.constant 0 : index
    %c0_68 = arith.constant 0 : index
    %51 = vector.load %arg10[%c0_66, %c6, %c0_67, %c0_68] : memref<1x7x2x128xf32, #tpu.memory_space<vmem>>, vector<1x1x2x128xf32>
    %52 = vector.shape_cast %51 : vector<1x1x2x128xf32> to vector<2x128xf32>
    %c0_69 = arith.constant 0 : index
    %c0_70 = arith.constant 0 : index
    %c0_71 = arith.constant 0 : index
    %53 = vector.load %arg9[%c0_69, %c0_70, %c0_71] : memref<2x8x128xf32, #tpu.memory_space<vmem>>, vector<2x8x128xf32>
    %cst_72 = arith.constant dense<0.000000e+00> : vector<2x128xf32>
    %54 = vector.multi_reduction <add>, %53, %cst_72 [1] : vector<2x8x128xf32> to vector<2x128xf32>
    %55 = arith.addf %52, %54 : vector<2x128xf32>
    %c0_73 = arith.constant 0 : index
    %c6_74 = arith.constant 6 : index
    %c0_75 = arith.constant 0 : index
    %c0_76 = arith.constant 0 : index
    %56 = vector.load %arg10[%c0_73, %c6_74, %c0_75, %c0_76] : memref<1x7x2x128xf32, #tpu.memory_space<vmem>>, vector<1x1x2x128xf32>
    %57 = vector.shape_cast %56 : vector<1x1x2x128xf32> to vector<2x128xf32>
    %58 = vector.shape_cast %55 : vector<2x128xf32> to vector<1x1x2x128xf32>
    tpu.vector_store %arg10[%c0_73, %c6_74, %c0_75, %c0_76], %58 {strides = array<i32>} : memref<1x7x2x128xf32, #tpu.memory_space<vmem>>, vector<1x1x2x128xf32>,
    return
  }
  func.func @transform_0(%arg0: i32, %arg1: i32, %arg2: i32) -> (i32, i32, i32) {
    %c1_i32 = arith.constant 1 : i32
    %0 = arith.muli %arg1, %c1_i32 : i32
    %1 = arith.addi %0, %arg2 : i32
    %c0_i32 = arith.constant 0 : i32
    %c0_i32_0 = arith.constant 0 : i32
    return %arg0, %1, %c0_i32 : i32, i32, i32
  }
  func.func @transform_1(%arg0: i32, %arg1: i32, %arg2: i32) -> (i32, i32, i32) {
    %c1_i32 = arith.constant 1 : i32
    %0 = arith.muli %arg1, %c1_i32 : i32
    %1 = arith.addi %0, %arg2 : i32
    %c0_i32 = arith.constant 0 : i32
    %c0_i32_0 = arith.constant 0 : i32
    return %arg0, %1, %c0_i32 : i32, i32, i32
  }
  func.func @transform_2(%arg0: i32, %arg1: i32, %arg2: i32) -> (i32, i32, i32) {
    %c1_i32 = arith.constant 1 : i32
    %0 = arith.muli %arg1, %c1_i32 : i32
    %1 = arith.addi %0, %arg2 : i32
    %c0_i32 = arith.constant 0 : i32
    %c0_i32_0 = arith.constant 0 : i32
    return %arg0, %1, %c0_i32 : i32, i32, i32
  }
  func.func @transform_3(%arg0: i32, %arg1: i32, %arg2: i32) -> (i32, i32, i32) {
    %c1_i32 = arith.constant 1 : i32
    %0 = arith.muli %arg1, %c1_i32 : i32
    %1 = arith.addi %0, %arg2 : i32
    %c0_i32 = arith.constant 0 : i32
    %c0_i32_0 = arith.constant 0 : i32
    return %arg0, %1, %c0_i32 : i32, i32, i32
  }
  func.func @transform_4(%arg0: i32, %arg1: i32, %arg2: i32) -> (i32, i32, i32) {
    %c1_i32 = arith.constant 1 : i32
    %0 = arith.muli %arg1, %c1_i32 : i32
    %1 = arith.addi %0, %arg2 : i32
    %c0_i32 = arith.constant 0 : i32
    %c0_i32_0 = arith.constant 0 : i32
    return %arg0, %1, %c0_i32 : i32, i32, i32
  }
  func.func @transform_5(%arg0: i32, %arg1: i32, %arg2: i32) -> (i32, i32, i32) {
    %c1_i32 = arith.constant 1 : i32
    %0 = arith.muli %arg1, %c1_i32 : i32
    %1 = arith.addi %0, %arg2 : i32
    %c0_i32 = arith.constant 0 : i32
    %c0_i32_0 = arith.constant 0 : i32
    return %arg0, %1, %c0_i32 : i32, i32, i32
  }
  func.func @transform_6(%arg0: i32, %arg1: i32, %arg2: i32) -> (i32, i32, i32) {
    %c1_i32 = arith.constant 1 : i32
    %0 = arith.muli %arg1, %c1_i32 : i32
    %1 = arith.addi %0, %arg2 : i32
    %c0_i32 = arith.constant 0 : i32
    %c0_i32_0 = arith.constant 0 : i32
    return %arg0, %1, %c0_i32 : i32, i32, i32
  }
  func.func @transform_7(%arg0: i32, %arg1: i32, %arg2: i32) -> (i32, i32, i32, i32) {
    %c0_i32 = arith.constant 0 : i32
    %c0_i32_0 = arith.constant 0 : i32
    %c0_i32_1 = arith.constant 0 : i32
    return %arg1, %c0_i32, %arg0, %c0_i32_0 : i32, i32, i32, i32
  }
}

</mosaic_0001>

<llo_original>
// kernel: tpu_custom_call.1
$region0: #{tpu_custom_call.1}
  #allocation0 [shape = 'u32[]', space=smem, size = 0x4, offset = 0x4, fixed_abs, tag = 'smem constant byte address 0x4 - core index']
  #allocation1 [shape = 'u32[144,128]{1,0:T(1,128)}', space=vmem, size = 0x12000, scoped, tag = 'internal scratch']
  %s0 = inlined_call_operand.hbm [shape: f32[2,8,128], index: 0, kind: input, shape index: {}]
  %s1 = inlined_call_operand.hbm [shape: f32[2,8,128], index: 1, kind: input, shape index: {}]
  %s2 = inlined_call_operand.hbm [shape: f32[2,8,128], index: 2, kind: input, shape index: {}]
  %s3 = inlined_call_operand.hbm [shape: f32[2,8,128], index: 3, kind: input, shape index: {}]
  %s4 = inlined_call_operand.hbm [shape: f32[2,8,128], index: 4, kind: input, shape index: {}]
  %s5 = inlined_call_operand.vmem [shape: f32[2,8,128], index: 5, kind: input, shape index: {}]
  %s6 = inlined_call_operand.hbm [shape: f32[2,8,128], index: 6, kind: input, shape index: {}]
  %s7 = inlined_call_operand.hbm [shape: f32[1,7,2,128], index: 7, kind: output, shape index: {}]
  %s8 = sld [smem:[#allocation0]]
  $region66: #{tpu_custom_call.1} parent=0
    _
  %s10 = ssub.s32 1, %s8
  %s11 = scalar_select 0, %s10, %s8
  $region1: #{tpu_custom_call.1} parent=0
    #allocation2 [shape = 'u8[8192]{0}', space=vmem, size = 0x2000, scoped, tag = 'input window, operand 0, single buffered']
    #allocation3 [shape = 's32[1]{0}', space=sflag, size = 0x4, scoped, tag = 'scoped memory for tpu_custom_call.1']
    #allocation4 [shape = 's32[1]{0}', space=sflag, size = 0x4, scoped, tag = 'scoped memory for tpu_custom_call.1']
    #allocation5 [shape = 'u8[8192]{0}', space=vmem, size = 0x2000, scoped, tag = 'input window, operand 1, single buffered']
    #allocation6 [shape = 's32[1]{0}', space=sflag, size = 0x4, scoped, tag = 'scoped memory for tpu_custom_call.1']
    #allocation7 [shape = 'u8[8192]{0}', space=vmem, size = 0x2000, scoped, tag = 'input window, operand 2, single buffered']
    #allocation8 [shape = 'u8[8192]{0}', space=vmem, size = 0x2000, scoped, tag = 'input window, operand 3, single buffered']
    #allocation9 [shape = 's32[1]{0}', space=sflag, size = 0x4, scoped, tag = 'scoped memory for tpu_custom_call.1']
    #allocation10 [shape = 'u8[8192]{0}', space=vmem, size = 0x2000, scoped, tag = 'input window, operand 4, single buffered']
    #allocation11 [shape = 'u8[8192]{0}', space=vmem, size = 0x2000, scoped, tag = 'input window, operand 6, single buffered']
    #allocation12 [shape = 's32[1]{0}', space=sflag, size = 0x4, scoped, tag = 'scoped memory for tpu_custom_call.1']
    #allocation13 [shape = 'u8[7168]{0}', space=vmem, size = 0x1c00, scoped, tag = 'output window, operand 0, single buffered']
    %12 = vsyncpa [#allocation3], 0
    %13 = vsyncpa [#allocation6], 0
    %14 = vsyncpa [#allocation9], 0
    %15 = vsyncpa [#allocation12], 0
    %16 = vsyncpa [#allocation4], 0
    // Predicated region
    $region2: #{tpu_custom_call.1} parent=1 // pred_check
      _
    $region3: #{tpu_custom_call.1} parent=1 // pred_check_branch
      %18 = sbr.rel (0) target = $region5
    $region4: #{tpu_custom_call.1} parent=1 // pred_region
      %s19 = sadd.s32 0, 0
      %s21 = ssub.s32 256, 256
      %22 = vsyncadd [#allocation3], %s21
      %s23 = smul.addr %s19, 128
      %s24 = scalar_lea.hbm %s0, %s23
      %s25 = sshll.u32 [#allocation2], 4
      %s26 = int_to_ptr.vmem [resolvable:$true] %s25
      %31 = dma.hbm_to_vmem [thread:$0]  %s24, 256, %s26, [#allocation3], 128, 128, 8
    $region5: #{tpu_custom_call.1} parent=1 // pred_fallthru
      _
    // Predicated region
    $region6: #{tpu_custom_call.1} parent=1 // pred_check
      _
    $region7: #{tpu_custom_call.1} parent=1 // pred_check_branch
      %33 = sbr.rel (0) target = $region9
    $region8: #{tpu_custom_call.1} parent=1 // pred_region
      %s34 = sadd.s32 0, 0
      %s36 = ssub.s32 256, 256
      %37 = vsyncadd [#allocation6], %s36
      %s38 = smul.addr %s34, 128
      %s39 = scalar_lea.hbm %s1, %s38
      %s40 = sshll.u32 [#allocation5], 4
      %s41 = int_to_ptr.vmem [resolvable:$true] %s40
      %46 = dma.hbm_to_vmem [thread:$0]  %s39, 256, %s41, [#allocation6], 128, 128, 8
    $region9: #{tpu_custom_call.1} parent=1 // pred_fallthru
      _
    // Predicated region
    $region10: #{tpu_custom_call.1} parent=1 // pred_check
      _
    $region11: #{tpu_custom_call.1} parent=1 // pred_check_branch
      %48 = sbr.rel (0) target = $region13
    $region12: #{tpu_custom_call.1} parent=1 // pred_region
      %s49 = sadd.s32 0, 0
      %s51 = ssub.s32 256, 256
      %52 = vsyncadd [#allocation6], %s51
      %s53 = smul.addr %s49, 128
      %s54 = scalar_lea.hbm %s2, %s53
      %s55 = sshll.u32 [#allocation7], 4
      %s56 = int_to_ptr.vmem [resolvable:$true] %s55
      %61 = dma.hbm_to_vmem [thread:$0]  %s54, 256, %s56, [#allocation6], 128, 128, 8
    $region13: #{tpu_custom_call.1} parent=1 // pred_fallthru
      _
    // Predicated region
    $region14: #{tpu_custom_call.1} parent=1 // pred_check
      _
    $region15: #{tpu_custom_call.1} parent=1 // pred_check_branch
      %63 = sbr.rel (0) target = $region17
    $region16: #{tpu_custom_call.1} parent=1 // pred_region
      %s64 = sadd.s32 0, 0
      %s66 = ssub.s32 256, 256
      %67 = vsyncadd [#allocation9], %s66
      %s68 = smul.addr %s64, 128
      %s69 = scalar_lea.hbm %s3, %s68
      %s70 = sshll.u32 [#allocation8], 4
      %s71 = int_to_ptr.vmem [resolvable:$true] %s70
      %76 = dma.hbm_to_vmem [thread:$0]  %s69, 256, %s71, [#allocation9], 128, 128, 8
    $region17: #{tpu_custom_call.1} parent=1 // pred_fallthru
      _
    // Predicated region
    $region18: #{tpu_custom_call.1} parent=1 // pred_check
      _
    $region19: #{tpu_custom_call.1} parent=1 // pred_check_branch
      %78 = sbr.rel (0) target = $region21
    $region20: #{tpu_custom_call.1} parent=1 // pred_region
      %s79 = sadd.s32 0, 0
      %s81 = ssub.s32 256, 256
      %82 = vsyncadd [#allocation9], %s81
      %s83 = smul.addr %s79, 128
      %s84 = scalar_lea.hbm %s4, %s83
      %s85 = sshll.u32 [#allocation10], 4
      %s86 = int_to_ptr.vmem [resolvable:$true] %s85
      %91 = dma.hbm_to_vmem [thread:$0]  %s84, 256, %s86, [#allocation9], 128, 128, 8
    $region21: #{tpu_custom_call.1} parent=1 // pred_fallthru
      _
    // Predicated region
    $region22: #{tpu_custom_call.1} parent=1 // pred_check
      _
    $region23: #{tpu_custom_call.1} parent=1 // pred_check_branch
      %93 = sbr.rel (0) target = $region25
    $region24: #{tpu_custom_call.1} parent=1 // pred_region
      %s94 = sadd.s32 0, 0
      %p95 = scmp.lt.s32.totalorder %s94, 0
      %s96 = scalar_select %p95, %s94, 0
      %s97 = smul.addr %s96, 8
      %s98 = scalar_lea.vmem %s5, %s97
      %s99 = sadd.s32 0, 0
    $region25: #{tpu_custom_call.1} parent=1 // pred_fallthru
      _
    // Predicated region
    $region26: #{tpu_custom_call.1} parent=1 // pred_check
      _
    $region27: #{tpu_custom_call.1} parent=1 // pred_check_branch
      %101 = sbr.rel (0) target = $region29
    $region28: #{tpu_custom_call.1} parent=1 // pred_region
      %s102 = sadd.s32 0, 0
      %s104 = ssub.s32 256, 256
      %105 = vsyncadd [#allocation12], %s104
      %s106 = smul.addr %s102, 128
      %s107 = scalar_lea.hbm %s6, %s106
      %s108 = sshll.u32 [#allocation11], 4
      %s109 = int_to_ptr.vmem [resolvable:$true] %s108
      %114 = dma.hbm_to_vmem [thread:$0]  %s107, 256, %s109, [#allocation12], 128, 128, 8
    $region29: #{tpu_custom_call.1} parent=1 // pred_fallthru
      _
    // Predicated region
    $region30: #{tpu_custom_call.1} parent=1 // pred_check
      _
    $region31: #{tpu_custom_call.1} parent=1 // pred_check_branch
      %116 = sbr.rel (0) target = $region33
    $region32: #{tpu_custom_call.1} parent=1 // pred_region
      %117 = dma.done [#allocation3], 256
    $region33: #{tpu_custom_call.1} parent=1 // pred_fallthru
      _
    // Predicated region
    $region34: #{tpu_custom_call.1} parent=1 // pred_check
      _
    $region35: #{tpu_custom_call.1} parent=1 // pred_check_branch
      %119 = sbr.rel (0) target = $region37
    $region36: #{tpu_custom_call.1} parent=1 // pred_region
      %120 = dma.done [#allocation6], 256
    $region37: #{tpu_custom_call.1} parent=1 // pred_fallthru
      _
    // Predicated region
    $region38: #{tpu_custom_call.1} parent=1 // pred_check
      _
    $region39: #{tpu_custom_call.1} parent=1 // pred_check_branch
      %122 = sbr.rel (0) target = $region41
    $region40: #{tpu_custom_call.1} parent=1 // pred_region
      %123 = dma.done [#allocation6], 256
    $region41: #{tpu_custom_call.1} parent=1 // pred_fallthru
      _
    // Predicated region
    $region42: #{tpu_custom_call.1} parent=1 // pred_check
      _
    $region43: #{tpu_custom_call.1} parent=1 // pred_check_branch
      %125 = sbr.rel (0) target = $region45
    $region44: #{tpu_custom_call.1} parent=1 // pred_region
      %126 = dma.done [#allocation9], 256
    $region45: #{tpu_custom_call.1} parent=1 // pred_fallthru
      _
    // Predicated region
    $region46: #{tpu_custom_call.1} parent=1 // pred_check
      _
    $region47: #{tpu_custom_call.1} parent=1 // pred_check_branch
      %128 = sbr.rel (0) target = $region49
    $region48: #{tpu_custom_call.1} parent=1 // pred_region
      %129 = dma.done [#allocation9], 256
    $region49: #{tpu_custom_call.1} parent=1 // pred_fallthru
      _
    // Predicated region
    $region50: #{tpu_custom_call.1} parent=1 // pred_check
      _
    $region51: #{tpu_custom_call.1} parent=1 // pred_check_branch
      %131 = sbr.rel (0) target = $region53
    $region52: #{tpu_custom_call.1} parent=1 // pred_region
      %132 = dma.done [#allocation12], 256
    $region53: #{tpu_custom_call.1} parent=1 // pred_fallthru
      _
    %s133 = sadd.s32 0, 0
    %p134 = scmp.lt.s32.totalorder %s133, 0
    %s135 = scalar_select %p134, %s133, 0
    %s136 = smul.addr %s135, 8
    %s137 = scalar_lea.vmem %s5, %s136
    %s138 = sadd.s32 0, 0
    %s139 = sadd.s32 0, 0
    %s140 = sadd.s32 0, 0
    %s141 = sadd.s32 0, 0
    %s142 = sadd.s32 0, 0
    %s143 = sadd.s32 0, 0
    %p144 = scmp.lt.s32.totalorder %s143, 0
    %s145 = scalar_select %p144, %s143, 0
    %s146 = smul.addr %s145, 8
    %s147 = scalar_lea.vmem %s5, %s146
    %s148 = sadd.s32 0, 0
    %s149 = sadd.s32 0, 0
    %p150 = scmp.eq.s32.totalorder 0, 0
    // Predicated region
    $region54: #{tpu_custom_call.1} parent=1 // pred_check
      %p151 = pneg %p150
    $region55: #{tpu_custom_call.1} parent=1 // pred_check_branch
      %153 = sbr.rel (%p151) target = $region57
    $region56: #{tpu_custom_call.1} parent=1 // pred_region
      %154 = vst [vmem:[#allocation13] sm:$0x3] 0.0
      %155 = vst [vmem:[#allocation13 + $0x2] sm:$0x3] 0.0
      %156 = vst [vmem:[#allocation13 + $0x4] sm:$0x3] 0.0
      %157 = vst [vmem:[#allocation13 + $0x6] sm:$0x3] 0.0
      %158 = vst [vmem:[#allocation13 + $0x8] sm:$0x3] 0.0
      %159 = vst [vmem:[#allocation13 + $0xa] sm:$0x3] 0.0
      %160 = vst [vmem:[#allocation13 + $0xc] sm:$0x3] 0.0
    $region57: #{tpu_custom_call.1} parent=1 // pred_fallthru
      _
    %v161 = vld [vmem:[#allocation13] sm:$0x3]
    %v162 = vld [vmem:[#allocation2] sm:$0xff]
    %v163 = vld [vmem:[#allocation2 + $0x8] sm:$0xff]
    %v164 = vrot.slane %v162, 4
    %v165 = vadd.f32 %v162, %v164
    %v166 = vrot.slane %v165, 2
    %v167 = vadd.f32 %v165, %v166
    %v168 = vrot.slane %v167, 1
    %v169 = vadd.f32 %v167, %v168
    %v170 = vrot.slane %v163, 4
    %v171 = vadd.f32 %v163, %v170
    %v172 = vrot.slane %v171, 2
    %v173 = vadd.f32 %v171, %v172
    %v174 = vrot.slane %v173, 1
    %v175 = vadd.f32 %v173, %v174
    %vm178 = vcmask 1041409
    %v179 = vsel %vm178, %v175, %v169
    %v181 = vadd.f32 %v161, %v179
    %182 = vst [vmem:[#allocation13] sm:$0x3] %v181
    %s183 = scalar_lea.vmem [#allocation13], 2
    %v184 = vld [vmem:[%s183] sm:$0x3]
    %v185 = vld [vmem:[#allocation5] sm:$0xff]
    %v186 = vld [vmem:[#allocation5 + $0x8] sm:$0xff]
    %v187 = vrot.slane %v185, 4
    %v188 = vadd.f32 %v185, %v187
    %v189 = vrot.slane %v188, 2
    %v190 = vadd.f32 %v188, %v189
    %v191 = vrot.slane %v190, 1
    %v192 = vadd.f32 %v190, %v191
    %v193 = vrot.slane %v186, 4
    %v194 = vadd.f32 %v186, %v193
    %v195 = vrot.slane %v194, 2
    %v196 = vadd.f32 %v194, %v195
    %v197 = vrot.slane %v196, 1
    %v198 = vadd.f32 %v196, %v197
    %v201 = vsel %vm178, %v198, %v192
    %v203 = vadd.f32 %v184, %v201
    %204 = vst [vmem:[%s183] sm:$0x3] %v203
    %s205 = scalar_lea.vmem [#allocation13], 4
    %v206 = vld [vmem:[%s205] sm:$0x3]
    %v207 = vld [vmem:[#allocation7] sm:$0xff]
    %v208 = vld [vmem:[#allocation7 + $0x8] sm:$0xff]
    %v209 = vrot.slane %v207, 4
    %v210 = vadd.f32 %v207, %v209
    %v211 = vrot.slane %v210, 2
    %v212 = vadd.f32 %v210, %v211
    %v213 = vrot.slane %v212, 1
    %v214 = vadd.f32 %v212, %v213
    %v215 = vrot.slane %v208, 4
    %v216 = vadd.f32 %v208, %v215
    %v217 = vrot.slane %v216, 2
    %v218 = vadd.f32 %v216, %v217
    %v219 = vrot.slane %v218, 1
    %v220 = vadd.f32 %v218, %v219
    %v223 = vsel %vm178, %v220, %v214
    %v225 = vadd.f32 %v206, %v223
    %226 = vst [vmem:[%s205] sm:$0x3] %v225
    %s227 = scalar_lea.vmem [#allocation13], 6
    %v228 = vld [vmem:[%s227] sm:$0x3]
    %v229 = vld [vmem:[#allocation8] sm:$0xff]
    %v230 = vld [vmem:[#allocation8 + $0x8] sm:$0xff]
    %v231 = vrot.slane %v229, 4
    %v232 = vadd.f32 %v229, %v231
    %v233 = vrot.slane %v232, 2
    %v234 = vadd.f32 %v232, %v233
    %v235 = vrot.slane %v234, 1
    %v236 = vadd.f32 %v234, %v235
    %v237 = vrot.slane %v230, 4
    %v238 = vadd.f32 %v230, %v237
    %v239 = vrot.slane %v238, 2
    %v240 = vadd.f32 %v238, %v239
    %v241 = vrot.slane %v240, 1
    %v242 = vadd.f32 %v240, %v241
    %v245 = vsel %vm178, %v242, %v236
    %v247 = vadd.f32 %v228, %v245
    %248 = vst [vmem:[%s227] sm:$0x3] %v247
    %s249 = scalar_lea.vmem [#allocation13], 8
    %v250 = vld [vmem:[%s249] sm:$0x3]
    %v251 = vld [vmem:[#allocation10] sm:$0xff]
    %v252 = vld [vmem:[#allocation10 + $0x8] sm:$0xff]
    %v253 = vrot.slane %v251, 4
    %v254 = vadd.f32 %v251, %v253
    %v255 = vrot.slane %v254, 2
    %v256 = vadd.f32 %v254, %v255
    %v257 = vrot.slane %v256, 1
    %v258 = vadd.f32 %v256, %v257
    %v259 = vrot.slane %v252, 4
    %v260 = vadd.f32 %v252, %v259
    %v261 = vrot.slane %v260, 2
    %v262 = vadd.f32 %v260, %v261
    %v263 = vrot.slane %v262, 1
    %v264 = vadd.f32 %v262, %v263
    %v267 = vsel %vm178, %v264, %v258
    %v269 = vadd.f32 %v250, %v267
    %270 = vst [vmem:[%s249] sm:$0x3] %v269
    %s271 = scalar_lea.vmem [#allocation13], 10
    %v272 = vld [vmem:[%s271] sm:$0x3]
    %v273 = vld [vmem:[%s147] sm:$0xff]
    %v274 = vld [vmem:[%s147 + $0x8] sm:$0xff]
    %v275 = vrot.slane %v273, 4
    %v276 = vadd.f32 %v273, %v275
    %v277 = vrot.slane %v276, 2
    %v278 = vadd.f32 %v276, %v277
    %v279 = vrot.slane %v278, 1
    %v280 = vadd.f32 %v278, %v279
    %v281 = vrot.slane %v274, 4
    %v282 = vadd.f32 %v274, %v281
    %v283 = vrot.slane %v282, 2
    %v284 = vadd.f32 %v282, %v283
    %v285 = vrot.slane %v284, 1
    %v286 = vadd.f32 %v284, %v285
    %v289 = vsel %vm178, %v286, %v280
    %v291 = vadd.f32 %v272, %v289
    %292 = vst [vmem:[%s271] sm:$0x3] %v291
    %s293 = scalar_lea.vmem [#allocation13], 12
    %v294 = vld [vmem:[%s293] sm:$0x3]
    %v295 = vld [vmem:[#allocation11] sm:$0xff]
    %v296 = vld [vmem:[#allocation11 + $0x8] sm:$0xff]
    %v297 = vrot.slane %v295, 4
    %v298 = vadd.f32 %v295, %v297
    %v299 = vrot.slane %v298, 2
    %v300 = vadd.f32 %v298, %v299
    %v301 = vrot.slane %v300, 1
    %v302 = vadd.f32 %v300, %v301
    %v303 = vrot.slane %v296, 4
    %v304 = vadd.f32 %v296, %v303
    %v305 = vrot.slane %v304, 2
    %v306 = vadd.f32 %v304, %v305
    %v307 = vrot.slane %v306, 1
    %v308 = vadd.f32 %v306, %v307
    %v311 = vsel %vm178, %v308, %v302
    %v313 = vadd.f32 %v294, %v311
    %314 = vst [vmem:[%s293] sm:$0x3] %v313
    // Predicated region
    $region58: #{tpu_custom_call.1} parent=1 // pred_check
      _
    $region59: #{tpu_custom_call.1} parent=1 // pred_check_branch
      %316 = sbr.rel (0) target = $region61
    $region60: #{tpu_custom_call.1} parent=1 // pred_region
      %s318 = ssub.s32 224, 224
      %319 = vsyncadd [#allocation4], %s318
      %s320 = sshll.u32 [#allocation13], 4
      %s321 = int_to_ptr.vmem [resolvable:$true] %s320
      %326 = dma.vmem_to_hbm [thread:$0]  %s321, 224, %s7, [#allocation4], 32, 32, 2
    $region61: #{tpu_custom_call.1} parent=1 // pred_fallthru
      _
    // Predicated region
    $region62: #{tpu_custom_call.1} parent=1 // pred_check
      _
    $region63: #{tpu_custom_call.1} parent=1 // pred_check_branch
      %328 = sbr.rel (0) target = $region65
    $region64: #{tpu_custom_call.1} parent=1 // pred_region
      %329 = dma.done [#allocation4], 224
    $region65: #{tpu_custom_call.1} parent=1 // pred_fallthru
      _
    %330 = vsyncpa [#allocation3], 1
    %331 = vsyncpa [#allocation6], 1
    %332 = vsyncpa [#allocation9], 1
    %333 = vsyncpa [#allocation12], 1
    %334 = vsyncpa [#allocation4], 1

</llo_original>
